<compile_context>
chip_gen: v5e
topology: v5e:2x2
jax: 0.10.0
libtpu: 0.0.40
codegen_flags: <defaults>
</compile_context>

<pallas_src>
import math
import functools

import jax
import jax.numpy as jnp
import numpy as np
from jax import lax
from jax.experimental import pallas as pl
from jax.experimental.pallas import tpu as pltpu


def _psconv_kernel(x_ref, m_ref, im_ref, cmask_ref, wcat_ref, bcat_ref,
                   out_ref, xp_ref, *, ker, H, W, matmul_dtype):
    """B images per grid step, channels-first, spatial flattened into lanes.

    Per image, ONE fused matmul computes both branches:
        ycat = wcat @ im2col(x) + bcat                  # (2*coutF, HW)
        out  = ycat[:coutF]*mask + ycat[coutF:]*inv_mask
    wcat stacks the high-branch kxk weights on top of the (1x1-folded) kxk
    low-branch weights; bcat carries the exact (border-aware) bias planes.
    Both masks are kept as inputs to preserve the module's exact semantics.
    """
    p = ker // 2
    B, cin, HW = x_ref.shape
    cinp = xp_ref.shape[0]                  # channels padded to 8-sublane multiple
    coutF = out_ref.shape[1]
    PAD = p * (W + 1)                       # flat-shift pad: covers |off| <= p*W + p
    PAD_L = xp_ref.shape[1] - HW - PAD      # lane-aligned left pad (>= PAD)

    wcat = wcat_ref[...]                    # (2*coutF, ker*ker*cinp), matmul dtype
    bcat = bcat_ref[...]                    # (2*coutF, HW), f32, exact bias planes
    # column-validity multiplier planes (pre-broadcast in the wrapper, hoisted
    # out of the tap loop -> no in-kernel broadcast_in_dim)
    cm = {dx: cmask_ref[dx] for dx in range(ker) if dx != p}    # (cinp, HW) each

    # Zero the padded scratch once per grid step: pad regions + dummy channel
    # rows stay zero; only the real-channel centre is rewritten per image.
    xp_ref[...] = jnp.zeros(xp_ref.shape, xp_ref.dtype)

    for b in range(B):                      # short unrolled loop: amortizes step cost
        xp_ref[pl.ds(0, cin), pl.ds(PAD_L, HW)] = x_ref[b]      # lane-aligned copy

        # im2col: gather the ker*ker shifted taps straight into registers
        # (no VMEM slab round-trip); every piece is a full (8,128)-tiled slab.
        taps = []
        for dy in range(ker):
            for dx in range(ker):
                start = PAD_L + (dy - p) * W + (dx - p)         # static, >= 0
                t = xp_ref[:, pl.ds(start, HW)]                 # (cinp, HW)
                if dx != p:                                     # kill column wrap lanes
                    t = t * cm[dx]
                taps.append(t)
        slab = jnp.concatenate(taps, axis=0).astype(matmul_dtype)   # (k*k*cinp, HW)

        # ONE fused MXU matmul for both branches (1x1 conv pre-folded into wcat).
        ycat = jnp.dot(wcat, slab, preferred_element_type=jnp.float32) + bcat

        y = ycat[:coutF] * m_ref[b] + ycat[coutF:] * im_ref[b]  # lane-dense
        out_ref[b] = y.astype(out_ref.dtype)


def pixel_shuffle_nchw(x, s):
    N, C, H, W = x.shape
    c = C // (s * s)
    x = x.reshape(N, c, s, s, H, W)
    x = jnp.transpose(x, (0, 1, 4, 2, 5, 3))
    return x.reshape(N, c, H * s, W * s)


def psconv_block(inx, mask, inv_mask, params, *, scale, ker,
                 matmul_dtype=jnp.float32, images_per_step=None):
    """inx: (N, cin, H, W); mask/inv_mask: (N, 1, H, W). Returns (N, cout, H*s, W*s)."""
    wh, bh, wl1, bl1, wl2, bl2 = params            # HWIO weights
    N, cin, H, W = inx.shape
    coutF = wh.shape[-1]
    cmid = wl1.shape[-1]
    p = ker // 2
    HW = H * W
    PAD = p * (W + 1)
    PAD_L = ((PAD + 127) // 128) * 128             # lane-aligned x copy into scratch
    cinp = ((cin + 7) // 8) * 8                    # pad channels to full sublanes
    Kp = ker * ker * cinp

    # Images per grid step: amortize fixed per-step cost but keep >= 2 grid
    # steps whenever N > 1 so both v7x TensorCores get work.
    if images_per_step is None:
        B = 1
        for cand in range(min(N // 2, 8), 0, -1):
            if N % cand == 0:
                B = cand
                break
    else:
        B = images_per_step
    assert N % B == 0, "images_per_step must divide the batch"
    # TODO(synk): for N == 1 on v7x, split HW into >= 2 halo'd spatial tiles
    # (and for real SR resolutions tile HW + set vmem_limit_bytes for v7x's
    # 64 MiB VMEM) instead of one whole-image grid step.

    # Activations stay NCHW; only free reshapes (no transposes, no HBM pad pass).
    x_flat = inx.reshape(N, cin, HW)
    m_flat = mask.reshape(N, 1, HW)
    im_flat = inv_mask.reshape(N, 1, HW)

    # ---- weight repack (tiny, once per call) ----
    # Fold the 1x1 conv into the low-branch kxk weights:
    #   wl2_fused[dy,dx,c,o] = sum_m wl1[0,0,c,m] * wl2[dy,dx,m,o]
    wl2_fused = jnp.einsum('cm,yxmo->yxco', wl1[0, 0], wl2)
    wh_t = jnp.transpose(wh, (3, 0, 1, 2)).reshape(coutF, ker * ker, cin)
    wl2f_t = jnp.transpose(wl2_fused, (3, 0, 1, 2)).reshape(coutF, ker * ker, cin)
    w_both = jnp.concatenate([wh_t, wl2f_t], axis=0)            # (2*coutF, k*k, cin)
    wcat = jnp.zeros((2 * coutF, ker * ker, cinp), jnp.float32)
    wcat = wcat.at[:, :, :cin].set(w_both).reshape(2 * coutF, Kp)
    wcat = wcat.astype(matmul_dtype)

    # Exact bias planes.  With nonzero bl1 the low-branch bias is spatially
    # varying at zero-padded borders, so convolve a constant bl1 image by wl2.
    dn = ('NHWC', 'HWIO', 'NHWC')
    bl1_img = jnp.broadcast_to(bl1.reshape(1, 1, 1, cmid), (1, H, W, cmid))
    low_bias = lax.conv_general_dilated(
        bl1_img, wl2, (1, 1), [(p, p), (p, p)], dimension_numbers=dn) + bl2
    low_bias = jnp.transpose(low_bias[0], (2, 0, 1)).reshape(coutF, HW)
    high_bias = jnp.broadcast_to(bh.reshape(coutF, 1), (coutF, HW))
    bcat = jnp.concatenate([high_bias, low_bias], axis=0)       # (2*coutF, HW) f32

    # Column-validity planes for the flat-shift im2col, pre-baked to
    # (ker, cinp, HW) so the kernel does zero broadcast work:
    #   cmask[dx, :, y*W+x] = 1.0 iff 0 <= x + (dx - p) < W
    # (row overflow is handled by the zero flat padding in VMEM).
    col = np.tile(np.arange(W, dtype=np.int32), H)
    cmask = np.stack(
        [((col + (dx - p) >= 0) & (col + (dx - p) < W)).astype(np.float32)
         for dx in range(ker)], axis=0)                          # (ker, HW)
    cmask = jnp.asarray(np.ascontiguousarray(
        np.broadcast_to(cmask[:, None, :], (ker, cinp, HW))))

    kernel = functools.partial(_psconv_kernel, ker=ker, H=H, W=W,
                               matmul_dtype=matmul_dtype)
    out_flat = pl.pallas_call(
        kernel,
        out_shape=jax.ShapeDtypeStruct((N, coutF, HW), jnp.float32),
        grid_spec=pltpu.PrefetchScalarGridSpec(
            num_scalar_prefetch=0,
            grid=(N // B,),
            in_specs=[
                pl.BlockSpec((B, cin, HW), lambda g: (g, 0, 0)),
                pl.BlockSpec((B, 1, HW), lambda g: (g, 0, 0)),
                pl.BlockSpec((B, 1, HW), lambda g: (g, 0, 0)),
                pl.BlockSpec((ker, cinp, HW), lambda g: (0, 0, 0)),
                pl.BlockSpec((2 * coutF, Kp), lambda g: (0, 0)),
                pl.BlockSpec((2 * coutF, HW), lambda g: (0, 0)),
            ],
            out_specs=pl.BlockSpec((B, coutF, HW), lambda g: (g, 0, 0)),
            scratch_shapes=[
                pltpu.VMEM((cinp, PAD_L + HW + PAD), jnp.float32),  # padded flat x
            ],
        ),
        compiler_params=pltpu.CompilerParams(
            dimension_semantics=("parallel",)),                  # batch -> v7x 2 TCs
    )(x_flat, m_flat, im_flat, cmask, wcat, bcat)

    out_nchw = out_flat.reshape(N, coutF, H, W)
    return pixel_shuffle_nchw(out_nchw, scale)


def psconv_ref(inx, mask, inv_mask, params, *, scale, ker):
    """Pure-JAX reference (lax.conv, unfused weights) for correctness checking."""
    wh, bh, wl1, bl1, wl2, bl2 = params
    x = jnp.transpose(inx, (0, 2, 3, 1))
    dn = ('NHWC', 'HWIO', 'NHWC')
    p = ker // 2
    conv = lambda a, w, pad: lax.conv_general_dilated(
        a, w, (1, 1), [(pad, pad), (pad, pad)], dimension_numbers=dn)
    m = jnp.transpose(mask, (0, 2, 3, 1))
    im = jnp.transpose(inv_mask, (0, 2, 3, 1))
    x1 = (conv(x, wh, p) + bh) * m
    x2 = conv(x, wl1, 0) + bl1
    x2 = (conv(x2, wl2, p) + bl2) * im
    y = jnp.transpose(x1 + x2, (0, 3, 1, 2))
    return pixel_shuffle_nchw(y, scale)


if __name__ == "__main__":
    # Module hyperparameters (small, consistent with the PyTorch __init__).
    scale, cin, cout, ker, r = 2, 4, 4, 3, 2
    coutF = cout * scale ** 2
    cmid = cin // r

    key = jax.random.PRNGKey(0)
    k = jax.random.split(key, 6)

    # Deterministic init matching the PyTorch scheme:
    # std = sqrt(2 / (out_channels * kH*kW)), biases zero.
    std_h = math.sqrt(2.0 / (coutF * ker * ker))
    std_l1 = math.sqrt(2.0 / (cmid * 1))
    std_l2 = math.sqrt(2.0 / (coutF * ker * ker))
    wh = jax.random.normal(k[0], (ker, ker, cin, coutF), jnp.float32) * std_h
    bh = jnp.zeros((coutF,), jnp.float32)
    wl1 = jax.random.normal(k[1], (1, 1, cin, cmid), jnp.float32) * std_l1
    bl1 = jnp.zeros((cmid,), jnp.float32)
    wl2 = jax.random.normal(k[2], (ker, ker, cmid, coutF), jnp.float32) * std_l2
    bl2 = jnp.zeros((coutF,), jnp.float32)
    params = (wh, bh, wl1, bl1, wl2, bl2)

    # N=4 -> 2 images per grid step AND 2 parallel grid steps (v7x: both TCs).
    N, H, W = 4, 16, 16
    x = jax.random.normal(k[3], (N, cin, H, W), jnp.float32)
    mask = (jax.random.uniform(k[4], (N, 1, H, W)) > 0.5).astype(jnp.float32)
    inv_mask = 1.0 - mask

    y = psconv_block(x, mask, inv_mask, params, scale=scale, ker=ker)
    y = jax.block_until_ready(y)

    y_ref = psconv_ref(x, mask, inv_mask, params, scale=scale, ker=ker)
    assert y.shape == (N, cout, H * scale, W * scale)
    np.testing.assert_allclose(np.asarray(y), np.asarray(y_ref), rtol=1e-4, atol=1e-4)

    print("KERNEL_OK")
</pallas_src>

<mosaic_0001>
module attributes {stable_mosaic.version = 11 : i64} {
  func.func @_psconv_kernel(%arg0: i32, %arg1: memref<2x4x256xf32, #tpu.memory_space<vmem>>, %arg2: memref<2x1x256xf32, #tpu.memory_space<vmem>>, %arg3: memref<2x1x256xf32, #tpu.memory_space<vmem>>, %arg4: memref<3x8x256xf32, #tpu.memory_space<vmem>>, %arg5: memref<32x72xf32, #tpu.memory_space<vmem>>, %arg6: memref<32x256xf32, #tpu.memory_space<vmem>>, %arg7: memref<2x16x256xf32, #tpu.memory_space<vmem>>, %arg8: memref<8x401xf32, #tpu.memory_space<vmem>>) attributes {dimension_semantics = [#tpu.dimension_semantics<parallel>], iteration_bounds = array<i64: 2>, scalar_prefetch = 0 : i64, scratch_operands = 1 : i64, tpu.core_type = #tpu.core_type<tc>, window_params = [{transform_indices = @transform_0, window_bounds = array<i64: 2, 4, 256>}, {transform_indices = @transform_1, window_bounds = array<i64: 2, 1, 256>}, {transform_indices = @transform_2, window_bounds = array<i64: 2, 1, 256>}, {pipeline_mode = #tpu.pipeline_mode<synchronous>, transform_indices = @transform_3, window_bounds = array<i64: 3, 8, 256>}, {pipeline_mode = #tpu.pipeline_mode<synchronous>, transform_indices = @transform_4, window_bounds = array<i64: 32, 72>}, {pipeline_mode = #tpu.pipeline_mode<synchronous>, transform_indices = @transform_5, window_bounds = array<i64: 32, 256>}, {transform_indices = @transform_6, window_bounds = array<i64: 2, 16, 256>}]} {
    %c0 = arith.constant 0 : index
    %c0_0 = arith.constant 0 : index
    %0 = vector.load %arg5[%c0, %c0_0] : memref<32x72xf32, #tpu.memory_space<vmem>>, vector<32x72xf32>
    %c0_1 = arith.constant 0 : index
    %c0_2 = arith.constant 0 : index
    %1 = vector.load %arg6[%c0_1, %c0_2] : memref<32x256xf32, #tpu.memory_space<vmem>>, vector<32x256xf32>
    %c0_3 = arith.constant 0 : index
    %c0_4 = arith.constant 0 : index
    %c0_5 = arith.constant 0 : index
    %2 = vector.load %arg4[%c0_3, %c0_4, %c0_5] : memref<3x8x256xf32, #tpu.memory_space<vmem>>, vector<1x8x256xf32>
    %3 = vector.shape_cast %2 : vector<1x8x256xf32> to vector<8x256xf32>
    %c2 = arith.constant 2 : index
    %c0_6 = arith.constant 0 : index
    %c0_7 = arith.constant 0 : index
    %4 = vector.load %arg4[%c2, %c0_6, %c0_7] : memref<3x8x256xf32, #tpu.memory_space<vmem>>, vector<1x8x256xf32>
    %5 = vector.shape_cast %4 : vector<1x8x256xf32> to vector<8x256xf32>
    %cst = arith.constant 0.000000e+00 : f32
    %6 = vector.broadcast %cst : f32 to vector<8x401xf32>
    %c0_8 = arith.constant 0 : index
    %c0_9 = arith.constant 0 : index
    %7 = vector.load %arg8[%c0_8, %c0_9] : memref<8x401xf32, #tpu.memory_space<vmem>>, vector<8x401xf32>
    tpu.vector_store %arg8[%c0_8, %c0_9], %6 {strides = array<i32>} : memref<8x401xf32, #tpu.memory_space<vmem>>, vector<8x401xf32>,
    %c0_10 = arith.constant 0 : index
    %c0_11 = arith.constant 0 : index
    %c0_12 = arith.constant 0 : index
    %8 = vector.load %arg1[%c0_10, %c0_11, %c0_12] : memref<2x4x256xf32, #tpu.memory_space<vmem>>, vector<1x4x256xf32>
    %9 = vector.shape_cast %8 : vector<1x4x256xf32> to vector<4x256xf32>
    %c0_13 = arith.constant 0 : index
    %c128 = arith.constant 128 : index
    %10 = vector.load %arg8[%c0_13, %c128] : memref<8x401xf32, #tpu.memory_space<vmem>>, vector<4x256xf32>
    tpu.vector_store %arg8[%c0_13, %c128], %9 {strides = array<i32>} : memref<8x401xf32, #tpu.memory_space<vmem>>, vector<4x256xf32>,
    %c0_14 = arith.constant 0 : index
    %c111 = arith.constant 111 : index
    %11 = vector.load %arg8[%c0_14, %c111] : memref<8x401xf32, #tpu.memory_space<vmem>>, vector<8x256xf32>
    %12 = arith.mulf %11, %3 : vector<8x256xf32>
    %c0_15 = arith.constant 0 : index
    %c112 = arith.constant 112 : index
    %13 = vector.load %arg8[%c0_15, %c112] : memref<8x401xf32, #tpu.memory_space<vmem>>, vector<8x256xf32>
    %c0_16 = arith.constant 0 : index
    %c113 = arith.constant 113 : index
    %14 = vector.load %arg8[%c0_16, %c113] : memref<8x401xf32, #tpu.memory_space<vmem>>, vector<8x256xf32>
    %15 = arith.mulf %14, %5 : vector<8x256xf32>
    %c0_17 = arith.constant 0 : index
    %c127 = arith.constant 127 : index
    %16 = vector.load %arg8[%c0_17, %c127] : memref<8x401xf32, #tpu.memory_space<vmem>>, vector<8x256xf32>
    %17 = arith.mulf %16, %3 : vector<8x256xf32>
    %c0_18 = arith.constant 0 : index
    %c128_19 = arith.constant 128 : index
    %18 = vector.load %arg8[%c0_18, %c128_19] : memref<8x401xf32, #tpu.memory_space<vmem>>, vector<8x256xf32>
    %c0_20 = arith.constant 0 : index
    %c129 = arith.constant 129 : index
    %19 = vector.load %arg8[%c0_20, %c129] : memref<8x401xf32, #tpu.memory_space<vmem>>, vector<8x256xf32>
    %20 = arith.mulf %19, %5 : vector<8x256xf32>
    %c0_21 = arith.constant 0 : index
    %c143 = arith.constant 143 : index
    %21 = vector.load %arg8[%c0_21, %c143] : memref<8x401xf32, #tpu.memory_space<vmem>>, vector<8x256xf32>
    %22 = arith.mulf %21, %3 : vector<8x256xf32>
    %c0_22 = arith.constant 0 : index
    %c144 = arith.constant 144 : index
    %23 = vector.load %arg8[%c0_22, %c144] : memref<8x401xf32, #tpu.memory_space<vmem>>, vector<8x256xf32>
    %c0_23 = arith.constant 0 : index
    %c145 = arith.constant 145 : index
    %24 = vector.load %arg8[%c0_23, %c145] : memref<8x401xf32, #tpu.memory_space<vmem>>, vector<8x256xf32>
    %25 = arith.mulf %24, %5 : vector<8x256xf32>
    %26 = tpu.concatenate %12, %13, %15, %17, %18, %20, %22, %23, %25 in 0 : vector<8x256xf32>, vector<8x256xf32>, vector<8x256xf32>, vector<8x256xf32>, vector<8x256xf32>, vector<8x256xf32>, vector<8x256xf32>, vector<8x256xf32>, vector<8x256xf32> -> vector<72x256xf32>
    %cst_24 = arith.constant dense<0.000000e+00> : vector<32x256xf32>
    %27 = tpu.matmul %0, %26, %cst_24 {dimension_numbers = #tpu.dot_dimension_numbers<[1], [0], [0], [1], [0, 0, 1, 1], [], []>} : vector<32x72xf32>, vector<72x256xf32>, vector<32x256xf32> -> vector<32x256xf32>
    %28 = arith.addf %27, %1 : vector<32x256xf32>
    %29 = vector.extract_strided_slice %28 {offsets = [0, 0], sizes = [16, 256], strides = [1, 1]} : vector<32x256xf32> to vector<16x256xf32>
    %c0_25 = arith.constant 0 : index
    %c0_26 = arith.constant 0 : index
    %c0_27 = arith.constant 0 : index
    %30 = vector.load %arg2[%c0_25, %c0_26, %c0_27] : memref<2x1x256xf32, #tpu.memory_space<vmem>>, vector<1x1x256xf32>
    %31 = vector.shape_cast %30 : vector<1x1x256xf32> to vector<1x256xf32>
    %32 = vector.broadcast %31 : vector<1x256xf32> to vector<16x256xf32>
    %33 = arith.mulf %29, %32 : vector<16x256xf32>
    %34 = vector.extract_strided_slice %28 {offsets = [16, 0], sizes = [16, 256], strides = [1, 1]} : vector<32x256xf32> to vector<16x256xf32>
    %c0_28 = arith.constant 0 : index
    %c0_29 = arith.constant 0 : index
    %c0_30 = arith.constant 0 : index
    %35 = vector.load %arg3[%c0_28, %c0_29, %c0_30] : memref<2x1x256xf32, #tpu.memory_space<vmem>>, vector<1x1x256xf32>
    %36 = vector.shape_cast %35 : vector<1x1x256xf32> to vector<1x256xf32>
    %37 = vector.broadcast %36 : vector<1x256xf32> to vector<16x256xf32>
    %38 = arith.mulf %34, %37 : vector<16x256xf32>
    %39 = arith.addf %33, %38 : vector<16x256xf32>
    %c0_31 = arith.constant 0 : index
    %c0_32 = arith.constant 0 : index
    %c0_33 = arith.constant 0 : index
    %40 = vector.load %arg7[%c0_31, %c0_32, %c0_33] : memref<2x16x256xf32, #tpu.memory_space<vmem>>, vector<1x16x256xf32>
    %41 = vector.shape_cast %40 : vector<1x16x256xf32> to vector<16x256xf32>
    %42 = vector.shape_cast %39 : vector<16x256xf32> to vector<1x16x256xf32>
    tpu.vector_store %arg7[%c0_31, %c0_32, %c0_33], %42 {strides = array<i32>} : memref<2x16x256xf32, #tpu.memory_space<vmem>>, vector<1x16x256xf32>,
    %c1 = arith.constant 1 : index
    %c0_34 = arith.constant 0 : index
    %c0_35 = arith.constant 0 : index
    %43 = vector.load %arg1[%c1, %c0_34, %c0_35] : memref<2x4x256xf32, #tpu.memory_space<vmem>>, vector<1x4x256xf32>
    %44 = vector.shape_cast %43 : vector<1x4x256xf32> to vector<4x256xf32>
    %c0_36 = arith.constant 0 : index
    %c128_37 = arith.constant 128 : index
    %45 = vector.load %arg8[%c0_36, %c128_37] : memref<8x401xf32, #tpu.memory_space<vmem>>, vector<4x256xf32>
    tpu.vector_store %arg8[%c0_36, %c128_37], %44 {strides = array<i32>} : memref<8x401xf32, #tpu.memory_space<vmem>>, vector<4x256xf32>,
    %c0_38 = arith.constant 0 : index
    %c111_39 = arith.constant 111 : index
    %46 = vector.load %arg8[%c0_38, %c111_39] : memref<8x401xf32, #tpu.memory_space<vmem>>, vector<8x256xf32>
    %47 = arith.mulf %46, %3 : vector<8x256xf32>
    %c0_40 = arith.constant 0 : index
    %c112_41 = arith.constant 112 : index
    %48 = vector.load %arg8[%c0_40, %c112_41] : memref<8x401xf32, #tpu.memory_space<vmem>>, vector<8x256xf32>
    %c0_42 = arith.constant 0 : index
    %c113_43 = arith.constant 113 : index
    %49 = vector.load %arg8[%c0_42, %c113_43] : memref<8x401xf32, #tpu.memory_space<vmem>>, vector<8x256xf32>
    %50 = arith.mulf %49, %5 : vector<8x256xf32>
    %c0_44 = arith.constant 0 : index
    %c127_45 = arith.constant 127 : index
    %51 = vector.load %arg8[%c0_44, %c127_45] : memref<8x401xf32, #tpu.memory_space<vmem>>, vector<8x256xf32>
    %52 = arith.mulf %51, %3 : vector<8x256xf32>
    %c0_46 = arith.constant 0 : index
    %c128_47 = arith.constant 128 : index
    %53 = vector.load %arg8[%c0_46, %c128_47] : memref<8x401xf32, #tpu.memory_space<vmem>>, vector<8x256xf32>
    %c0_48 = arith.constant 0 : index
    %c129_49 = arith.constant 129 : index
    %54 = vector.load %arg8[%c0_48, %c129_49] : memref<8x401xf32, #tpu.memory_space<vmem>>, vector<8x256xf32>
    %55 = arith.mulf %54, %5 : vector<8x256xf32>
    %c0_50 = arith.constant 0 : index
    %c143_51 = arith.constant 143 : index
    %56 = vector.load %arg8[%c0_50, %c143_51] : memref<8x401xf32, #tpu.memory_space<vmem>>, vector<8x256xf32>
    %57 = arith.mulf %56, %3 : vector<8x256xf32>
    %c0_52 = arith.constant 0 : index
    %c144_53 = arith.constant 144 : index
    %58 = vector.load %arg8[%c0_52, %c144_53] : memref<8x401xf32, #tpu.memory_space<vmem>>, vector<8x256xf32>
    %c0_54 = arith.constant 0 : index
    %c145_55 = arith.constant 145 : index
    %59 = vector.load %arg8[%c0_54, %c145_55] : memref<8x401xf32, #tpu.memory_space<vmem>>, vector<8x256xf32>
    %60 = arith.mulf %59, %5 : vector<8x256xf32>
    %61 = tpu.concatenate %47, %48, %50, %52, %53, %55, %57, %58, %60 in 0 : vector<8x256xf32>, vector<8x256xf32>, vector<8x256xf32>, vector<8x256xf32>, vector<8x256xf32>, vector<8x256xf32>, vector<8x256xf32>, vector<8x256xf32>, vector<8x256xf32> -> vector<72x256xf32>
    %cst_56 = arith.constant dense<0.000000e+00> : vector<32x256xf32>
    %62 = tpu.matmul %0, %61, %cst_56 {dimension_numbers = #tpu.dot_dimension_numbers<[1], [0], [0], [1], [0, 0, 1, 1], [], []>} : vector<32x72xf32>, vector<72x256xf32>, vector<32x256xf32> -> vector<32x256xf32>
    %63 = arith.addf %62, %1 : vector<32x256xf32>
    %64 = vector.extract_strided_slice %63 {offsets = [0, 0], sizes = [16, 256], strides = [1, 1]} : vector<32x256xf32> to vector<16x256xf32>
    %c1_57 = arith.constant 1 : index
    %c0_58 = arith.constant 0 : index
    %c0_59 = arith.constant 0 : index
    %65 = vector.load %arg2[%c1_57, %c0_58, %c0_59] : memref<2x1x256xf32, #tpu.memory_space<vmem>>, vector<1x1x256xf32>
    %66 = vector.shape_cast %65 : vector<1x1x256xf32> to vector<1x256xf32>
    %67 = vector.broadcast %66 : vector<1x256xf32> to vector<16x256xf32>
    %68 = arith.mulf %64, %67 : vector<16x256xf32>
    %69 = vector.extract_strided_slice %63 {offsets = [16, 0], sizes = [16, 256], strides = [1, 1]} : vector<32x256xf32> to vector<16x256xf32>
    %c1_60 = arith.constant 1 : index
    %c0_61 = arith.constant 0 : index
    %c0_62 = arith.constant 0 : index
    %70 = vector.load %arg3[%c1_60, %c0_61, %c0_62] : memref<2x1x256xf32, #tpu.memory_space<vmem>>, vector<1x1x256xf32>
    %71 = vector.shape_cast %70 : vector<1x1x256xf32> to vector<1x256xf32>
    %72 = vector.broadcast %71 : vector<1x256xf32> to vector<16x256xf32>
    %73 = arith.mulf %69, %72 : vector<16x256xf32>
    %74 = arith.addf %68, %73 : vector<16x256xf32>
    %c1_63 = arith.constant 1 : index
    %c0_64 = arith.constant 0 : index
    %c0_65 = arith.constant 0 : index
    %75 = vector.load %arg7[%c1_63, %c0_64, %c0_65] : memref<2x16x256xf32, #tpu.memory_space<vmem>>, vector<1x16x256xf32>
    %76 = vector.shape_cast %75 : vector<1x16x256xf32> to vector<16x256xf32>
    %77 = vector.shape_cast %74 : vector<16x256xf32> to vector<1x16x256xf32>
    tpu.vector_store %arg7[%c1_63, %c0_64, %c0_65], %77 {strides = array<i32>} : memref<2x16x256xf32, #tpu.memory_space<vmem>>, vector<1x16x256xf32>,
    return
  }
  func.func @transform_0(%arg0: i32) -> (i32, i32, i32) {
    %c0_i32 = arith.constant 0 : i32
    %c0_i32_0 = arith.constant 0 : i32
    %c0_i32_1 = arith.constant 0 : i32
    return %arg0, %c0_i32, %c0_i32_0 : i32, i32, i32
  }
  func.func @transform_1(%arg0: i32) -> (i32, i32, i32) {
    %c0_i32 = arith.constant 0 : i32
    %c0_i32_0 = arith.constant 0 : i32
    %c0_i32_1 = arith.constant 0 : i32
    return %arg0, %c0_i32, %c0_i32_0 : i32, i32, i32
  }
  func.func @transform_2(%arg0: i32) -> (i32, i32, i32) {
    %c0_i32 = arith.constant 0 : i32
    %c0_i32_0 = arith.constant 0 : i32
    %c0_i32_1 = arith.constant 0 : i32
    return %arg0, %c0_i32, %c0_i32_0 : i32, i32, i32
  }
  func.func @transform_3(%arg0: i32) -> (i32, i32, i32) {
    %c0_i32 = arith.constant 0 : i32
    %c0_i32_0 = arith.constant 0 : i32
    %c0_i32_1 = arith.constant 0 : i32
    %c0_i32_2 = arith.constant 0 : i32
    return %c0_i32, %c0_i32_0, %c0_i32_1 : i32, i32, i32
  }
  func.func @transform_4(%arg0: i32) -> (i32, i32) {
    %c0_i32 = arith.constant 0 : i32
    %c0_i32_0 = arith.constant 0 : i32
    %c0_i32_1 = arith.constant 0 : i32
    return %c0_i32, %c0_i32_0 : i32, i32
  }
  func.func @transform_5(%arg0: i32) -> (i32, i32) {
    %c0_i32 = arith.constant 0 : i32
    %c0_i32_0 = arith.constant 0 : i32
    %c0_i32_1 = arith.constant 0 : i32
    return %c0_i32, %c0_i32_0 : i32, i32
  }
  func.func @transform_6(%arg0: i32) -> (i32, i32, i32) {
    %c0_i32 = arith.constant 0 : i32
    %c0_i32_0 = arith.constant 0 : i32
    %c0_i32_1 = arith.constant 0 : i32
    return %arg0, %c0_i32, %c0_i32_0 : i32, i32, i32
  }
}

</mosaic_0001>

<llo_original>
// kernel: tpu_custom_call.1
$region0: #{tpu_custom_call.1}
  #allocation0 [shape = 'u32[]', space=smem, size = 0x4, offset = 0x4, fixed_abs, tag = 'smem constant byte address 0x4 - core index']
  #allocation1 [shape = 'u32[72,128]{1,0:T(1,128)}', space=vmem, size = 0x9000, scoped, tag = 'internal scratch']
  #allocation2 [shape = 'f32[8,401]{1,0:T(8,128)}', space=vmem, size = 0x4000, scoped, tag = 'scratch operand']
  %s0 = inlined_call_operand.hbm [shape: f32[4,4,256], index: 0, kind: input, shape index: {}]
  %s1 = inlined_call_operand.hbm [shape: f32[4,1,256], index: 1, kind: input, shape index: {}]
  %s2 = inlined_call_operand.hbm [shape: f32[4,1,256], index: 2, kind: input, shape index: {}]
  %s3 = inlined_call_operand.hbm [shape: f32[3,8,256], index: 3, kind: input, shape index: {}]
  %s4 = inlined_call_operand.hbm [shape: f32[32,72], index: 4, kind: input, shape index: {}]
  %s5 = inlined_call_operand.hbm [shape: f32[32,256], index: 5, kind: input, shape index: {}]
  %s6 = inlined_call_operand.hbm [shape: f32[4,16,256], index: 6, kind: output, shape index: {}]
  %s7 = sld [smem:[#allocation0]]
  $region81: #{tpu_custom_call.1} parent=0
    _
  %s9 = ssub.s32 1, %s7
  %s10 = scalar_select 0, %s9, %s7
  $region1: #{tpu_custom_call.1} parent=0
    #allocation3 [shape = 'u8[16384]{0}', space=vmem, size = 0x4000, scoped, tag = 'input window, operand 0']
    #allocation4 [shape = 's32[2]{0}', space=sflag, size = 0x8, scoped, tag = 'scoped memory for tpu_custom_call.1']
    #allocation5 [shape = 's32[2]{0}', space=sflag, size = 0x8, scoped, tag = 'scoped memory for tpu_custom_call.1']
    #allocation6 [shape = 'u8[4096]{0}', space=vmem, size = 0x1000, scoped, tag = 'input window, operand 1']
    #allocation7 [shape = 's32[2]{0}', space=sflag, size = 0x8, scoped, tag = 'scoped memory for tpu_custom_call.1']
    #allocation8 [shape = 'u8[4096]{0}', space=vmem, size = 0x1000, scoped, tag = 'input window, operand 2']
    #allocation9 [shape = 'u8[24576]{0}', space=vmem, size = 0x6000, scoped, tag = 'input window, operand 3, single buffered']
    #allocation10 [shape = 's32[1]{0}', space=sflag, size = 0x4, scoped, tag = 'scoped memory for tpu_custom_call.1']
    #allocation11 [shape = 'u8[16384]{0}', space=vmem, size = 0x4000, scoped, tag = 'input window, operand 4, single buffered']
    #allocation12 [shape = 'u8[32768]{0}', space=vmem, size = 0x8000, scoped, tag = 'input window, operand 5, single buffered']
    #allocation13 [shape = 's32[1]{0}', space=sflag, size = 0x4, scoped, tag = 'scoped memory for tpu_custom_call.1']
    #allocation14 [shape = 'u8[65536]{0}', space=vmem, size = 0x10000, scoped, tag = 'output window, operand 0']
    %11 = vsyncpa [#allocation4], 0
    %s12 = scalar_lea.sflag [#allocation4], 1
    %13 = vsyncpa %s12, 0
    %14 = vsyncpa [#allocation7], 0
    %s15 = scalar_lea.sflag [#allocation7], 1
    %16 = vsyncpa %s15, 0
    %17 = vsyncpa [#allocation10], 0
    %18 = vsyncpa [#allocation13], 0
    %19 = vsyncpa [#allocation5], 0
    %s20 = scalar_lea.sflag [#allocation5], 1
    %21 = vsyncpa %s20, 0
    loop: start=0, step=1, limit=4
    $region2: #{tpu_custom_call.1} parent=1 // loop_pre_header
      _
    $region3: #{tpu_custom_call.1} parent=1 // loop_header
      %s23 = sphi 0, %s27
      %p24 = scmp.ge.s32.totalorder %s23, 4
      %s33 = sphi 0, %s35
      %s36 = sphi 0, %s33
      %s37 = sphi 0, %s36
      %s53 = sphi 0, %s37
      %s59 = sphi 0, %s61
      %s62 = sphi 0, %s59
      %s63 = sphi 0, %s62
      %s79 = sphi 0, %s63
      %s85 = sphi 0, %s87
      %s88 = sphi 0, %s85
      %s89 = sphi 0, %s88
      %s105 = sphi 0, %s89
      %s109 = sphi 0, %s109
      %s111 = sphi 0, %s109
      %s112 = sphi 0, %s111
      %s126 = sphi 0, %s112
      %s130 = sphi 0, %s130
      %s132 = sphi 0, %s130
      %s133 = sphi 0, %s132
      %s147 = sphi 0, %s133
      %s151 = sphi 0, %s151
      %s153 = sphi 0, %s151
      %s154 = sphi 0, %s153
      %s168 = sphi 0, %s154
      %s174 = sphi 0, %s176
      %s177 = sphi 0, %s174
      %s178 = sphi 0, %s177
      %s194 = sphi 0, %s178
    $region4: #{tpu_custom_call.1} parent=1 // loop_header_branch
      %26 = sbr.rel (%p24) target = $region8
    $region5: #{tpu_custom_call.1} parent=1 // loop_body
      %s28 = ssub.s32 %s23, 1
      %s29 = ssub.s32 %s23, 2
      %s30 = sadd.s32 %s23, 1
      %s31 = ssub.s32 %s23, %s30
      %p32 = scmp.eq.s32.totalorder %s31, 0
      %s34 = sadd.s32 %s33, 1
      %s35 = scalar_select %p32, %s33, %s34
      %p38 = pneg %p32
      %p39 = scmp.eq.s32.totalorder %s23, 1
      %p40 = por %p38, %p39
      %p41 = scmp.ne.s32.totalorder %s33, %s36
      %p42 = scmp.eq.s32.totalorder %s23, 0
      %p43 = por %p41, %p42
      %p44 = scmp.ne.s32.totalorder %s33, %s36
      %p45 = scmp.eq.s32.totalorder %s28, 1
      %p46 = por %p44, %p45
      %p47 = scmp.ne.s32.totalorder %s36, %s37
      %p48 = scmp.eq.s32.totalorder %s28, 0
      %p49 = por %p47, %p48
      %p50 = scmp.ne.s32.totalorder %s36, %s37
      %p51 = scmp.eq.s32.totalorder %s29, 1
      %p52 = por %p50, %p51
      %p54 = scmp.ne.s32.totalorder %s37, %s53
      %p55 = scmp.eq.s32.totalorder %s29, 0
      %p56 = por %p54, %p55
      %s57 = ssub.s32 %s23, %s30
      %p58 = scmp.eq.s32.totalorder %s57, 0
      %s60 = sadd.s32 %s59, 1
      %s61 = scalar_select %p58, %s59, %s60
      %p64 = pneg %p58
      %p65 = scmp.eq.s32.totalorder %s23, 1
      %p66 = por %p64, %p65
      %p67 = scmp.ne.s32.totalorder %s59, %s62
      %p68 = scmp.eq.s32.totalorder %s23, 0
      %p69 = por %p67, %p68
      %p70 = scmp.ne.s32.totalorder %s59, %s62
      %p71 = scmp.eq.s32.totalorder %s28, 1
      %p72 = por %p70, %p71
      %p73 = scmp.ne.s32.totalorder %s62, %s63
      %p74 = scmp.eq.s32.totalorder %s28, 0
      %p75 = por %p73, %p74
      %p76 = scmp.ne.s32.totalorder %s62, %s63
      %p77 = scmp.eq.s32.totalorder %s29, 1
      %p78 = por %p76, %p77
      %p80 = scmp.ne.s32.totalorder %s63, %s79
      %p81 = scmp.eq.s32.totalorder %s29, 0
      %p82 = por %p80, %p81
      %s83 = ssub.s32 %s23, %s30
      %p84 = scmp.eq.s32.totalorder %s83, 0
      %s86 = sadd.s32 %s85, 1
      %s87 = scalar_select %p84, %s85, %s86
      %p90 = pneg %p84
      %p91 = scmp.eq.s32.totalorder %s23, 1
      %p92 = por %p90, %p91
      %p93 = scmp.ne.s32.totalorder %s85, %s88
      %p94 = scmp.eq.s32.totalorder %s23, 0
      %p95 = por %p93, %p94
      %p96 = scmp.ne.s32.totalorder %s85, %s88
      %p97 = scmp.eq.s32.totalorder %s28, 1
      %p98 = por %p96, %p97
      %p99 = scmp.ne.s32.totalorder %s88, %s89
      %p100 = scmp.eq.s32.totalorder %s28, 0
      %p101 = por %p99, %p100
      %p102 = scmp.ne.s32.totalorder %s88, %s89
      %p103 = scmp.eq.s32.totalorder %s29, 1
      %p104 = por %p102, %p103
      %p106 = scmp.ne.s32.totalorder %s89, %s105
      %p107 = scmp.eq.s32.totalorder %s29, 0
      %p108 = por %p106, %p107
      %s110 = sadd.s32 %s109, 1
      %p113 = scmp.eq.s32.totalorder %s23, 1
      %p114 = scmp.ne.s32.totalorder %s109, %s111
      %p115 = scmp.eq.s32.totalorder %s23, 0
      %p116 = por %p114, %p115
      %p117 = scmp.ne.s32.totalorder %s109, %s111
      %p118 = scmp.eq.s32.totalorder %s28, 1
      %p119 = por %p117, %p118
      %p120 = scmp.ne.s32.totalorder %s111, %s112
      %p121 = scmp.eq.s32.totalorder %s28, 0
      %p122 = por %p120, %p121
      %p123 = scmp.ne.s32.totalorder %s111, %s112
      %p124 = scmp.eq.s32.totalorder %s29, 1
      %p125 = por %p123, %p124
      %p127 = scmp.ne.s32.totalorder %s112, %s126
      %p128 = scmp.eq.s32.totalorder %s29, 0
      %p129 = por %p127, %p128
      %s131 = sadd.s32 %s130, 1
      %p134 = scmp.eq.s32.totalorder %s23, 1
      %p135 = scmp.ne.s32.totalorder %s130, %s132
      %p136 = scmp.eq.s32.totalorder %s23, 0
      %p137 = por %p135, %p136
      %p138 = scmp.ne.s32.totalorder %s130, %s132
      %p139 = scmp.eq.s32.totalorder %s28, 1
      %p140 = por %p138, %p139
      %p141 = scmp.ne.s32.totalorder %s132, %s133
      %p142 = scmp.eq.s32.totalorder %s28, 0
      %p143 = por %p141, %p142
      %p144 = scmp.ne.s32.totalorder %s132, %s133
      %p145 = scmp.eq.s32.totalorder %s29, 1
      %p146 = por %p144, %p145
      %p148 = scmp.ne.s32.totalorder %s133, %s147
      %p149 = scmp.eq.s32.totalorder %s29, 0
      %p150 = por %p148, %p149
      %s152 = sadd.s32 %s151, 1
      %p155 = scmp.eq.s32.totalorder %s23, 1
      %p156 = scmp.ne.s32.totalorder %s151, %s153
      %p157 = scmp.eq.s32.totalorder %s23, 0
      %p158 = por %p156, %p157
      %p159 = scmp.ne.s32.totalorder %s151, %s153
      %p160 = scmp.eq.s32.totalorder %s28, 1
      %p161 = por %p159, %p160
      %p162 = scmp.ne.s32.totalorder %s153, %s154
      %p163 = scmp.eq.s32.totalorder %s28, 0
      %p164 = por %p162, %p163
      %p165 = scmp.ne.s32.totalorder %s153, %s154
      %p166 = scmp.eq.s32.totalorder %s29, 1
      %p167 = por %p165, %p166
      %p169 = scmp.ne.s32.totalorder %s154, %s168
      %p170 = scmp.eq.s32.totalorder %s29, 0
      %p171 = por %p169, %p170
      %s172 = ssub.s32 %s23, %s30
      %p173 = scmp.eq.s32.totalorder %s172, 0
      %s175 = sadd.s32 %s174, 1
      %s176 = scalar_select %p173, %s174, %s175
      %p179 = pneg %p173
      %p180 = scmp.eq.s32.totalorder %s23, 1
      %p181 = por %p179, %p180
      %p182 = scmp.ne.s32.totalorder %s174, %s177
      %p183 = scmp.eq.s32.totalorder %s23, 0
      %p184 = por %p182, %p183
      %p185 = scmp.ne.s32.totalorder %s174, %s177
      %p186 = scmp.eq.s32.totalorder %s28, 1
      %p187 = por %p185, %p186
      %p188 = scmp.ne.s32.totalorder %s177, %s178
      %p189 = scmp.eq.s32.totalorder %s28, 0
      %p190 = por %p188, %p189
      %p191 = scmp.ne.s32.totalorder %s177, %s178
      %p192 = scmp.eq.s32.totalorder %s29, 1
      %p193 = por %p191, %p192
      %p195 = scmp.ne.s32.totalorder %s178, %s194
      %p196 = scmp.eq.s32.totalorder %s29, 0
      %p197 = por %p195, %p196
      %p198 = scmp.le.s32.totalorder 1, %s23
      %p199 = scmp.lt.s32.totalorder %s23, 3
      %p200 = pnand %p198, %p199
      %p201 = pneg %p200
      // Predicated region
      $region9: #{tpu_custom_call.1} parent=5 // pred_check
        _
      $region10: #{tpu_custom_call.1} parent=5 // pred_check_branch
        %203 = sbr.rel (%p200) target = $region12
      $region11: #{tpu_custom_call.1} parent=5 // pred_region
        %s204 = ssub.s32 %s23, 1
        // Predicated region
        $region13: #{tpu_custom_call.1} parent=11 // pred_check
          %p205 = pneg %p122
        $region14: #{tpu_custom_call.1} parent=11 // pred_check_branch
          %207 = sbr.rel (%p205) target = $region16
        $region15: #{tpu_custom_call.1} parent=11 // pred_region
          %209 = vsyncadd [#allocation10], 0
          %s210 = sshll.u32 %s3, 4
          %s211 = int_to_ptr.hbm [resolvable:$true] %s210
          %s212 = sshll.u32 [#allocation9], 4
          %s213 = int_to_ptr.vmem [resolvable:$true] %s212
          %218 = dma.hbm_to_vmem [thread:$0]  %s211, 768, %s213, [#allocation10], 256, 256, 16
        $region16: #{tpu_custom_call.1} parent=11 // pred_fallthru
          _
        // Predicated region
        $region17: #{tpu_custom_call.1} parent=11 // pred_check
          %p219 = pneg %p143
        $region18: #{tpu_custom_call.1} parent=11 // pred_check_branch
          %221 = sbr.rel (%p219) target = $region20
        $region19: #{tpu_custom_call.1} parent=11 // pred_region
          %223 = vsyncadd [#allocation10], 0
          %s224 = sshll.u32 %s4, 4
          %s225 = int_to_ptr.hbm [resolvable:$true] %s224
          %s226 = sshll.u32 [#allocation11], 4
          %s227 = int_to_ptr.vmem [resolvable:$true] %s226
          %232 = dma.hbm_to_vmem [thread:$0]  %s225, 512, %s227, [#allocation10], 128, 128, 8
        $region20: #{tpu_custom_call.1} parent=11 // pred_fallthru
          _
        // Predicated region
        $region21: #{tpu_custom_call.1} parent=11 // pred_check
          %p233 = pneg %p164
        $region22: #{tpu_custom_call.1} parent=11 // pred_check_branch
          %235 = sbr.rel (%p233) target = $region24
        $region23: #{tpu_custom_call.1} parent=11 // pred_region
          %237 = vsyncadd [#allocation13], 0
          %s238 = sshll.u32 %s5, 4
          %s239 = int_to_ptr.hbm [resolvable:$true] %s238
          %s240 = sshll.u32 [#allocation12], 4
          %s241 = int_to_ptr.vmem [resolvable:$true] %s240
          %246 = dma.hbm_to_vmem [thread:$0]  %s239, 1024, %s241, [#allocation13], 256, 256, 16
        $region24: #{tpu_custom_call.1} parent=11 // pred_fallthru
          _
      $region12: #{tpu_custom_call.1} parent=5 // pred_fallthru
        _
      %p247 = scmp.lt.s32.totalorder %s23, 2
      // Predicated region
      $region25: #{tpu_custom_call.1} parent=5 // pred_check
        %p248 = pneg %p247
      $region26: #{tpu_custom_call.1} parent=5 // pred_check_branch
        %250 = sbr.rel (%p248) target = $region28
      $region27: #{tpu_custom_call.1} parent=5 // pred_region
        // Predicated region
        $region29: #{tpu_custom_call.1} parent=27 // pred_check
          %p251 = pneg %p43
        $region30: #{tpu_custom_call.1} parent=27 // pred_check_branch
          %253 = sbr.rel (%p251) target = $region32
        $region31: #{tpu_custom_call.1} parent=27 // pred_region
          %s254 = sand.u32 %s33, 1
          %s255 = scalar_lea.sflag [#allocation4], %s254
          %s256 = sand.u32 %s33, 1
          %s257 = smul.addr %s256, 16
          %s258 = scalar_lea.vmem [#allocation3], %s257
          %s259 = smul.u32 2, %s23
          %261 = vsyncadd %s255, 0
          %s262 = smul.addr %s259, 2
          %s263 = smul.addr %s262, 4
          %s264 = scalar_lea.hbm %s0, %s263
          %s265 = sshll.u32 %s264, 4
          %s266 = int_to_ptr.hbm [resolvable:$true] %s265
          %s267 = sshll.u32 %s258, 4
          %s268 = int_to_ptr.vmem [resolvable:$true] %s267
          %273 = dma.hbm_to_vmem [thread:$0]  %s266, 256, %s268, %s255, 128, 128, 8
        $region32: #{tpu_custom_call.1} parent=27 // pred_fallthru
          _
        // Predicated region
        $region33: #{tpu_custom_call.1} parent=27 // pred_check
          %p274 = pneg %p69
        $region34: #{tpu_custom_call.1} parent=27 // pred_check_branch
          %276 = sbr.rel (%p274) target = $region36
        $region35: #{tpu_custom_call.1} parent=27 // pred_region
          %s277 = sand.u32 %s23, 1
          %s278 = scalar_lea.sflag [#allocation7], %s277
          %s279 = sand.u32 %s59, 1
          %s280 = smul.addr %s279, 4
          %s281 = scalar_lea.vmem [#allocation6], %s280
          %s282 = smul.u32 2, %s23
          %284 = vsyncadd %s278, 0
          %s285 = smul.addr %s282, 2
          %s286 = scalar_lea.hbm %s1, %s285
          %s287 = sshll.u32 %s286, 4
          %s288 = int_to_ptr.hbm [resolvable:$true] %s287
          %s289 = sshll.u32 %s281, 4
          %s290 = int_to_ptr.vmem [resolvable:$true] %s289
          %295 = dma.hbm_to_vmem [thread:$0]  %s288, 64, %s290, %s278, 32, 32, 2
        $region36: #{tpu_custom_call.1} parent=27 // pred_fallthru
          _
        // Predicated region
        $region37: #{tpu_custom_call.1} parent=27 // pred_check
          %p296 = pneg %p95
        $region38: #{tpu_custom_call.1} parent=27 // pred_check_branch
          %298 = sbr.rel (%p296) target = $region40
        $region39: #{tpu_custom_call.1} parent=27 // pred_region
          %s299 = sand.u32 %s23, 1
          %s300 = scalar_lea.sflag [#allocation7], %s299
          %s301 = sand.u32 %s85, 1
          %s302 = smul.addr %s301, 4
          %s303 = scalar_lea.vmem [#allocation8], %s302
          %s304 = smul.u32 2, %s23
          %306 = vsyncadd %s300, 0
          %s307 = smul.addr %s304, 2
          %s308 = scalar_lea.hbm %s2, %s307
          %s309 = sshll.u32 %s308, 4
          %s310 = int_to_ptr.hbm [resolvable:$true] %s309
          %s311 = sshll.u32 %s303, 4
          %s312 = int_to_ptr.vmem [resolvable:$true] %s311
          %317 = dma.hbm_to_vmem [thread:$0]  %s310, 64, %s312, %s300, 32, 32, 2
        $region40: #{tpu_custom_call.1} parent=27 // pred_fallthru
          _
      $region28: #{tpu_custom_call.1} parent=5 // pred_fallthru
        _
      %p318 = scmp.le.s32.totalorder 1, %s23
      %p319 = scmp.lt.s32.totalorder %s23, 3
      %p320 = pnand %p318, %p319
      %p321 = pneg %p320
      // Predicated region
      $region41: #{tpu_custom_call.1} parent=5 // pred_check
        _
      $region42: #{tpu_custom_call.1} parent=5 // pred_check_branch
        %323 = sbr.rel (%p320) target = $region44
      $region43: #{tpu_custom_call.1} parent=5 // pred_region
        %s324 = ssub.s32 %s23, 1
        %s325 = sand.u32 %s36, 1
        %s326 = scalar_lea.sflag [#allocation4], %s325
        %s327 = sand.u32 %s36, 1
        %s328 = smul.addr %s327, 16
        %s329 = scalar_lea.vmem [#allocation3], %s328
        // Predicated region
        $region45: #{tpu_custom_call.1} parent=43 // pred_check
          %p330 = pneg %p49
        $region46: #{tpu_custom_call.1} parent=43 // pred_check_branch
          %332 = sbr.rel (%p330) target = $region48
        $region47: #{tpu_custom_call.1} parent=43 // pred_region
          %334 = dma.done %s326, 256
        $region48: #{tpu_custom_call.1} parent=43 // pred_fallthru
          _
        %s335 = sand.u32 %s28, 1
        %s336 = scalar_lea.sflag [#allocation7], %s335
        %s337 = sand.u32 %s62, 1
        %s338 = smul.addr %s337, 4
        %s339 = scalar_lea.vmem [#allocation6], %s338
        // Predicated region
        $region49: #{tpu_custom_call.1} parent=43 // pred_check
          %p340 = pneg %p75
        $region50: #{tpu_custom_call.1} parent=43 // pred_check_branch
          %342 = sbr.rel (%p340) target = $region52
        $region51: #{tpu_custom_call.1} parent=43 // pred_region
          %344 = dma.done %s336, 64
        $region52: #{tpu_custom_call.1} parent=43 // pred_fallthru
          _
        %s345 = sand.u32 %s28, 1
        %s346 = scalar_lea.sflag [#allocation7], %s345
        %s347 = sand.u32 %s88, 1
        %s348 = smul.addr %s347, 4
        %s349 = scalar_lea.vmem [#allocation8], %s348
        // Predicated region
        $region53: #{tpu_custom_call.1} parent=43 // pred_check
          %p350 = pneg %p101
        $region54: #{tpu_custom_call.1} parent=43 // pred_check_branch
          %352 = sbr.rel (%p350) target = $region56
        $region55: #{tpu_custom_call.1} parent=43 // pred_region
          %354 = dma.done %s346, 64
        $region56: #{tpu_custom_call.1} parent=43 // pred_fallthru
          _
        // Predicated region
        $region57: #{tpu_custom_call.1} parent=43 // pred_check
          %p355 = pneg %p122
        $region58: #{tpu_custom_call.1} parent=43 // pred_check_branch
          %357 = sbr.rel (%p355) target = $region60
        $region59: #{tpu_custom_call.1} parent=43 // pred_region
          %359 = dma.done [#allocation10], 768
        $region60: #{tpu_custom_call.1} parent=43 // pred_fallthru
          _
        // Predicated region
        $region61: #{tpu_custom_call.1} parent=43 // pred_check
          %p360 = pneg %p143
        $region62: #{tpu_custom_call.1} parent=43 // pred_check_branch
          %362 = sbr.rel (%p360) target = $region64
        $region63: #{tpu_custom_call.1} parent=43 // pred_region
          %364 = dma.done [#allocation10], 512
        $region64: #{tpu_custom_call.1} parent=43 // pred_fallthru
          _
        // Predicated region
        $region65: #{tpu_custom_call.1} parent=43 // pred_check
          %p365 = pneg %p164
        $region66: #{tpu_custom_call.1} parent=43 // pred_check_branch
          %367 = sbr.rel (%p365) target = $region68
        $region67: #{tpu_custom_call.1} parent=43 // pred_region
          %369 = dma.done [#allocation13], 1024
        $region68: #{tpu_custom_call.1} parent=43 // pred_fallthru
          _
        %s370 = sand.u32 %s36, 1
        %s371 = scalar_lea.sflag [#allocation4], %s370
        %s372 = sand.u32 %s36, 1
        %s373 = smul.addr %s372, 16
        %s374 = scalar_lea.vmem [#allocation3], %s373
        %p375 = pneg %p49
        %p376 = pneg %p46
        %s377 = sand.u32 %s28, 1
        %s378 = scalar_lea.sflag [#allocation7], %s377
        %s379 = sand.u32 %s62, 1
        %s380 = smul.addr %s379, 4
        %s381 = scalar_lea.vmem [#allocation6], %s380
        %p382 = pneg %p75
        %p383 = pneg %p72
        %s384 = sand.u32 %s28, 1
        %s385 = scalar_lea.sflag [#allocation7], %s384
        %s386 = sand.u32 %s88, 1
        %s387 = smul.addr %s386, 4
        %s388 = scalar_lea.vmem [#allocation8], %s387
        %p389 = pneg %p101
        %p390 = pneg %p98
        %p391 = pneg %p122
        %p392 = pneg %p119
        %p393 = pneg %p143
        %p394 = pneg %p140
        %p395 = pneg %p164
        %p396 = pneg %p161
        %p397 = pneg %p190
        %p398 = pneg %p187
        %s399 = sand.u32 %s177, 1
        %s400 = scalar_lea.sflag [#allocation5], %s399
        %s401 = sand.u32 %s177, 1
        %s402 = smul.addr %s401, 64
        %s403 = scalar_lea.vmem [#allocation14], %s402
        %s404 = smul.u32 2, %s28
        %s405 = smul.u32 2, %s28
        %s406 = smul.u32 2, %s28
        %s407 = smul.u32 2, %s28
        %v408 = vld [vmem:[#allocation11] sm:$0xff]
        %v409 = vld [vmem:[#allocation11 + $0x8] sm:$0xff]
        %v410 = vld [vmem:[#allocation11 + $0x10] sm:$0xff]
        %v411 = vld [vmem:[#allocation11 + $0x18] sm:$0xff]
        %v412 = vld [vmem:[#allocation12] sm:$0xff]
        %v413 = vld [vmem:[#allocation12 + $0x8] sm:$0xff]
        %v414 = vld [vmem:[#allocation12 + $0x10] sm:$0xff]
        %v415 = vld [vmem:[#allocation12 + $0x18] sm:$0xff]
        %v416 = vld [vmem:[#allocation12 + $0x20] sm:$0xff]
        %v417 = vld [vmem:[#allocation12 + $0x28] sm:$0xff]
        %v418 = vld [vmem:[#allocation12 + $0x30] sm:$0xff]
        %v419 = vld [vmem:[#allocation12 + $0x38] sm:$0xff]
        %v420 = vld [vmem:[#allocation9] sm:$0xff]
        %v421 = vld [vmem:[#allocation9 + $0x8] sm:$0xff]
        %s422 = scalar_lea.vmem [#allocation9], 32
        %v423 = vld [vmem:[%s422] sm:$0xff]
        %v424 = vld [vmem:[%s422 + $0x8] sm:$0xff]
        %425 = vst [vmem:[#allocation2] sm:$0xff] 0.0
        %426 = vst [vmem:[#allocation2 + $0x8] sm:$0xff] 0.0
        %427 = vst [vmem:[#allocation2 + $0x10] sm:$0xff] 0.0
        %vm428 = vcmask 138240
        %429 = vst.msk [vmem:[#allocation2 + $0x18] sm:$0xff] %vm428, 0.0
        %v430 = vld [vmem:[%s329] sm:$0xff]
        %432 = vst [vmem:[#allocation1] ss:$2 sm:$0xff] %v430
        %v433 = vld.sshfl [vmem:[#allocation1] sm:$0xff pattern:$0x75316420]
        %v434 = vld.sshfl [vmem:[#allocation1 + $0x8] sm:$0xff pattern:$0x75316420]
        %437 = vst [vmem:[#allocation2 + $0x8] sm:$0xf] %v433
        %438 = vst [vmem:[#allocation2 + $0x10] sm:$0xf] %v434
        %v439 = vld [vmem:[#allocation2] sm:$0xff]
        %v440 = vld [vmem:[#allocation2 + $0x8] sm:$0xff]
        %v441 = vld [vmem:[#allocation2 + $0x10] sm:$0xff]
        %444 = vrot.lane.b32.xlu0 %v420, 111
        %v445 = vpop.permute.xlu0 %444
        %446 = vrot.lane.b32.xlu0 %v421, 111
        %v447 = vpop.permute.xlu0 %446
        %vm448 = vcmask 908288
        %v449 = vsel %vm448, %v445, %v447
        %v453 = vmul.f32 %v439, %v445
        %v454 = vmul.f32 %v440, %v449
        %v455 = vmul.f32 %v441, %v447
        %458 = vrot.lane.b32.xlu0 %v423, 113
        %v459 = vpop.permute.xlu0 %458
        %460 = vrot.lane.b32.xlu0 %v424, 113
        %v461 = vpop.permute.xlu0 %460
        %vm462 = vcmask 924672
        %v463 = vsel %vm462, %v459, %v461
        %v467 = vmul.f32 %v439, %v459
        %v468 = vmul.f32 %v440, %v463
        %v469 = vmul.f32 %v441, %v461
        %470 = vrot.lane.b32.xlu0 %v420, 127
        %v471 = vpop.permute.xlu0 %470
        %472 = vrot.lane.b32.xlu0 %v421, 127
        %v473 = vpop.permute.xlu0 %472
        %vm474 = vcmask 1039360
        %v475 = vsel %vm474, %v471, %v473
        %v479 = vmul.f32 %v439, %v471
        %v480 = vmul.f32 %v440, %v475
        %v481 = vmul.f32 %v441, %v473
        %v482 = vld [vmem:[#allocation2 + $0x18] sm:$0xff]
        %483 = vrot.lane.b32.xlu0 %v423, 1
        %v484 = vpop.permute.xlu0 %483
        %485 = vrot.lane.b32.xlu0 %v424, 1
        %v486 = vpop.permute.xlu0 %485
        %vm487 = vcmask 7168
        %v488 = vsel %vm487, %v484, %v486
        %v492 = vmul.f32 %v440, %v484
        %v493 = vmul.f32 %v441, %v488
        %v494 = vmul.f32 %v482, %v486
        %495 = vrot.lane.b32.xlu0 %v420, 15
        %v496 = vpop.permute.xlu0 %495
        %497 = vrot.lane.b32.xlu0 %v421, 15
        %v498 = vpop.permute.xlu0 %497
        %vm499 = vcmask 121856
        %v500 = vsel %vm499, %v496, %v498
        %v504 = vmul.f32 %v440, %v496
        %v505 = vmul.f32 %v441, %v500
        %v506 = vmul.f32 %v482, %v498
        %507 = vrot.lane.b32.xlu0 %v423, 17
        %v508 = vpop.permute.xlu0 %507
        %509 = vrot.lane.b32.xlu0 %v424, 17
        %v510 = vpop.permute.xlu0 %509
        %v511 = vsel %vm428, %v508, %v510
        %v515 = vmul.f32 %v440, %v508
        %v516 = vmul.f32 %v441, %v511
        %v517 = vmul.f32 %v482, %v510
        %521 = vrot.lane.b32.xlu0 %v439, 127
        %v522 = vpop.permute.xlu0 %521
        %523 = vrot.lane.b32.xlu0 %v440, 127
        %v524 = vpop.permute.xlu0 %523
        %525 = vrot.lane.b32.xlu0 %v441, 127
        %v526 = vpop.permute.xlu0 %525
        %v527 = vsel %vm474, %v522, %v524
        %v528 = vsel %vm474, %v524, %v526
        %532 = vrot.lane.b32.xlu0 %v467, 126
        %v533 = vpop.permute.xlu0 %532
        %534 = vrot.lane.b32.xlu0 %v468, 126
        %v535 = vpop.permute.xlu0 %534
        %536 = vrot.lane.b32.xlu0 %v469, 126
        %v537 = vpop.permute.xlu0 %536
        %vm538 = vcmask 1031168
        %v539 = vsel %vm538, %v533, %v535
        %v540 = vsel %vm538, %v535, %v537
        %544 = vrot.lane.b32.xlu0 %v479, 112
        %v545 = vpop.permute.xlu0 %544
        %546 = vrot.lane.b32.xlu0 %v480, 112
        %v547 = vpop.permute.xlu0 %546
        %548 = vrot.lane.b32.xlu0 %v481, 112
        %v549 = vpop.permute.xlu0 %548
        %vm550 = vcmask 916480
        %v551 = vsel %vm550, %v545, %v547
        %v552 = vsel %vm550, %v547, %v549
        %553 = vrot.lane.b32.xlu0 %v440, 111
        %v554 = vpop.permute.xlu0 %553
        %555 = vrot.lane.b32.xlu0 %v441, 111
        %v556 = vpop.permute.xlu0 %555
        %v557 = vsel %vm448, %v554, %v556
        %561 = vrot.lane.b32.xlu0 %v492, 110
        %v562 = vpop.permute.xlu0 %561
        %563 = vrot.lane.b32.xlu0 %v493, 110
        %v564 = vpop.permute.xlu0 %563
        %565 = vrot.lane.b32.xlu0 %v494, 110
        %v566 = vpop.permute.xlu0 %565
        %vm567 = vcmask 900096
        %v568 = vsel %vm567, %v562, %v564
        %v569 = vsel %vm567, %v564, %v566
        %573 = vrot.lane.b32.xlu0 %v504, 96
        %v574 = vpop.permute.xlu0 %573
        %575 = vrot.lane.b32.xlu0 %v505, 96
        %v576 = vpop.permute.xlu0 %575
        %577 = vrot.lane.b32.xlu0 %v506, 96
        %v578 = vpop.permute.xlu0 %577
        %vm579 = vcmask 785408
        %v580 = vsel %vm579, %v574, %v576
        %v581 = vsel %vm579, %v576, %v578
        %583 = vrot.lane.b32.xlu0 %v440, 95
        %v584 = vpop.permute.xlu0 %583
        %585 = vrot.lane.b32.xlu0 %v441, 95
        %v586 = vpop.permute.xlu0 %585
        %587 = vrot.lane.b32.xlu0 %v482, 95
        %v588 = vpop.permute.xlu0 %587
        %vm589 = vcmask 777216
        %v590 = vsel %vm589, %v584, %v586
        %v591 = vsel %vm589, %v586, %v588
        %595 = vrot.lane.b32.xlu0 %v515, 94
        %v596 = vpop.permute.xlu0 %595
        %597 = vrot.lane.b32.xlu0 %v516, 94
        %v598 = vpop.permute.xlu0 %597
        %599 = vrot.lane.b32.xlu0 %v517, 94
        %v600 = vpop.permute.xlu0 %599
        %vm601 = vcmask 769024
        %v602 = vsel %vm601, %v596, %v598
        %v603 = vsel %vm601, %v598, %v600
        %607 = vrot.lane.b32.xlu0 %v453, 17
        %v608 = vpop.permute.xlu0 %607
        %609 = vrot.lane.b32.xlu0 %v454, 17
        %v610 = vpop.permute.xlu0 %609
        %611 = vrot.lane.b32.xlu0 %v455, 17
        %v612 = vpop.permute.xlu0 %611
        %613 = vrot.lane.b32.xlu0 %v527, 17
        %v614 = vpop.permute.xlu0 %613
        %615 = vrot.lane.b32.xlu0 %v528, 17
        %v616 = vpop.permute.xlu0 %615
        %617 = vrot.lane.b32.xlu0 %v526, 17
        %v618 = vpop.permute.xlu0 %617
        %619 = vrot.lane.b32.xlu0 %v539, 17
        %v620 = vpop.permute.xlu0 %619
        %621 = vrot.lane.b32.xlu0 %v540, 17
        %v622 = vpop.permute.xlu0 %621
        %623 = vrot.lane.b32.xlu0 %v537, 17
        %v624 = vpop.permute.xlu0 %623
        %625 = vrot.lane.b32.xlu0 %v551, 17
        %v626 = vpop.permute.xlu0 %625
        %627 = vrot.lane.b32.xlu0 %v552, 17
        %v628 = vpop.permute.xlu0 %627
        %629 = vrot.lane.b32.xlu0 %v549, 17
        %v630 = vpop.permute.xlu0 %629
        %631 = vrot.lane.b32.xlu0 %v554, 17
        %v632 = vpop.permute.xlu0 %631
        %633 = vrot.lane.b32.xlu0 %v557, 17
        %v634 = vpop.permute.xlu0 %633
        %635 = vrot.lane.b32.xlu0 %v556, 17
        %v636 = vpop.permute.xlu0 %635
        %637 = vrot.lane.b32.xlu0 %v562, 17
        %v638 = vpop.permute.xlu0 %637
        %639 = vrot.lane.b32.xlu0 %v568, 17
        %v640 = vpop.permute.xlu0 %639
        %641 = vrot.lane.b32.xlu0 %v569, 17
        %v642 = vpop.permute.xlu0 %641
        %643 = vrot.lane.b32.xlu0 %v574, 17
        %v644 = vpop.permute.xlu0 %643
        %645 = vrot.lane.b32.xlu0 %v580, 17
        %v646 = vpop.permute.xlu0 %645
        %647 = vrot.lane.b32.xlu0 %v581, 17
        %v648 = vpop.permute.xlu0 %647
        %649 = vrot.lane.b32.xlu0 %v584, 17
        %v650 = vpop.permute.xlu0 %649
        %651 = vrot.lane.b32.xlu0 %v590, 17
        %v652 = vpop.permute.xlu0 %651
        %653 = vrot.lane.b32.xlu0 %v591, 17
        %v654 = vpop.permute.xlu0 %653
        %655 = vrot.lane.b32.xlu0 %v596, 17
        %v656 = vpop.permute.xlu0 %655
        %657 = vrot.lane.b32.xlu0 %v602, 17
        %v658 = vpop.permute.xlu0 %657
        %659 = vrot.lane.b32.xlu0 %v603, 17
        %v660 = vpop.permute.xlu0 %659
        %v661 = vsel %vm428, %v608, %v610
        %v662 = vsel %vm428, %v610, %v612
        %v663 = vsel %vm428, %v614, %v616
        %v664 = vsel %vm428, %v616, %v618
        %v665 = vsel %vm428, %v620, %v622
        %v666 = vsel %vm428, %v622, %v624
        %v667 = vsel %vm428, %v626, %v628
        %v668 = vsel %vm428, %v628, %v630
        %v669 = vsel %vm428, %v632, %v634
        %v670 = vsel %vm428, %v634, %v636
        %v671 = vsel %vm428, %v638, %v640
        %v672 = vsel %vm428, %v640, %v642
        %v673 = vsel %vm428, %v644, %v646
        %v674 = vsel %vm428, %v646, %v648
        %v675 = vsel %vm428, %v650, %v652
        %v676 = vsel %vm428, %v652, %v654
        %v677 = vsel %vm428, %v656, %v658
        %v678 = vsel %vm428, %v658, %v660
        %vm697 = vcmask 588800
        %v699 = vsel %vm697, %v408, 0
        %v702 = vsel %vm697, %v409, 0
        %v705 = vsel %vm697, %v410, 0
        %v708 = vsel %vm697, %v411, 0
        %710 = vmatpush.msra.mxu0 0.0
        %711 = vmatpush.msra.mxu0 0.0
        %712 = vmatpush.msra.mxu0 0.0
        %713 = vmatpush.msra.mxu0 0.0
        %714 = vmatpush.msra.mxu0 0.0
        %715 = vmatpush.msra.mxu0 0.0
        %716 = vmatpush.msra.mxu0 0.0
        %717 = vmatpush.msra.mxu0 %v677
        %718 = vmatpush.msra.mxu0 %v675
        %719 = vmatpush.msra.mxu0 %v673
        %720 = vmatpush.msra.mxu0 %v671
        %721 = vmatpush.msra.mxu0 %v669
        %722 = vmatpush.msra.mxu0 %v667
        %723 = vmatpush.msra.mxu0 %v665
        %724 = vmatpush.msra.mxu0 %v663
        %725 = vmatpush.msra.mxu0 %v661
        %726 = vmatmul.f32.gmra.mxu0 %v699
        %v727 = vpop.f32.mrf.mxu0
        %v728 = vadd.f32 %v412, %v727
        %729 = vmatmul.f32.gmra.mxu0 %v702
        %v730 = vpop.f32.mrf.mxu0
        %v731 = vadd.f32 %v414, %v730
        %732 = vmatmul.f32.gmra.mxu0 %v705
        %v733 = vpop.f32.mrf.mxu0
        %v734 = vadd.f32 %v416, %v733
        %735 = vmatmul.f32.gmra.mxu0 %v708
        %v736 = vpop.f32.mrf.mxu0
        %v737 = vadd.f32 %v418, %v736
        %738 = vdwg.mxu0
        %739 = vmatpush.msra.mxu0 0.0
        %740 = vmatpush.msra.mxu0 0.0
        %741 = vmatpush.msra.mxu0 0.0
        %742 = vmatpush.msra.mxu0 0.0
        %743 = vmatpush.msra.mxu0 0.0
        %744 = vmatpush.msra.mxu0 0.0
        %745 = vmatpush.msra.mxu0 0.0
        %746 = vmatpush.msra.mxu0 %v678
        %747 = vmatpush.msra.mxu0 %v676
        %748 = vmatpush.msra.mxu0 %v674
        %749 = vmatpush.msra.mxu0 %v672
        %750 = vmatpush.msra.mxu0 %v670
        %751 = vmatpush.msra.mxu0 %v668
        %752 = vmatpush.msra.mxu0 %v666
        %753 = vmatpush.msra.mxu0 %v664
        %754 = vmatpush.msra.mxu0 %v662
        %755 = vmatmul.f32.gmra.mxu0 %v699
        %v756 = vpop.f32.mrf.mxu0
        %v757 = vadd.f32 %v413, %v756
        %758 = vmatmul.f32.gmra.mxu0 %v702
        %v759 = vpop.f32.mrf.mxu0
        %v760 = vadd.f32 %v415, %v759
        %761 = vmatmul.f32.gmra.mxu0 %v705
        %v762 = vpop.f32.mrf.mxu0
        %v763 = vadd.f32 %v417, %v762
        %764 = vmatmul.f32.gmra.mxu0 %v708
        %v765 = vpop.f32.mrf.mxu0
        %v766 = vadd.f32 %v419, %v765
        %767 = vdwg.mxu0
        %v768 = vld [vmem:[%s339] sm:$0x3]
        %v770 = vperm.slane %v768, 0
        %v771 = vperm.slane %v768, 1
        %v774 = vmul.f32 %v728, %v770
        %v775 = vmul.f32 %v757, %v771
        %v776 = vmul.f32 %v731, %v770
        %v777 = vmul.f32 %v760, %v771
        %v778 = vld [vmem:[%s349] sm:$0x3]
        %v780 = vperm.slane %v778, 0
        %v781 = vperm.slane %v778, 1
        %v784 = vmul.f32 %v734, %v780
        %v785 = vmul.f32 %v763, %v781
        %v786 = vmul.f32 %v737, %v780
        %v787 = vmul.f32 %v766, %v781
        %v788 = vadd.f32 %v774, %v784
        %v789 = vadd.f32 %v775, %v785
        %v790 = vadd.f32 %v776, %v786
        %v791 = vadd.f32 %v777, %v787
        %792 = vst [vmem:[%s403] sm:$0xff] %v788
        %793 = vst [vmem:[%s403 + $0x8] sm:$0xff] %v789
        %794 = vst [vmem:[%s403 + $0x10] sm:$0xff] %v790
        %795 = vst [vmem:[%s403 + $0x18] sm:$0xff] %v791
        %s796 = scalar_lea.vmem %s329, 8 [#allocation3]
        %v797 = vld [vmem:[%s796] sm:$0xff]
        %799 = vst [vmem:[#allocation1] ss:$2 sm:$0xff] %v797
        %v800 = vld.sshfl [vmem:[#allocation1] sm:$0xff pattern:$0x75316420]
        %v801 = vld.sshfl [vmem:[#allocation1 + $0x8] sm:$0xff pattern:$0x75316420]
        %804 = vst [vmem:[#allocation2 + $0x8] sm:$0xf] %v800
        %805 = vst [vmem:[#allocation2 + $0x10] sm:$0xf] %v801
        %v806 = vld [vmem:[#allocation2] sm:$0xff]
        %v807 = vld [vmem:[#allocation2 + $0x8] sm:$0xff]
        %v808 = vld [vmem:[#allocation2 + $0x10] sm:$0xff]
        %v809 = vmul.f32 %v806, %v445
        %v810 = vmul.f32 %v807, %v449
        %v811 = vmul.f32 %v808, %v447
        %v812 = vmul.f32 %v806, %v459
        %v813 = vmul.f32 %v807, %v463
        %v814 = vmul.f32 %v808, %v461
        %v815 = vmul.f32 %v806, %v471
        %v816 = vmul.f32 %v807, %v475
        %v817 = vmul.f32 %v808, %v473
        %v818 = vld [vmem:[#allocation2 + $0x18] sm:$0xff]
        %v819 = vmul.f32 %v807, %v484
        %v820 = vmul.f32 %v808, %v488
        %v821 = vmul.f32 %v818, %v486
        %v822 = vmul.f32 %v807, %v496
        %v823 = vmul.f32 %v808, %v500
        %v824 = vmul.f32 %v818, %v498
        %v825 = vmul.f32 %v807, %v508
        %v826 = vmul.f32 %v808, %v511
        %v827 = vmul.f32 %v818, %v510
        %831 = vrot.lane.b32.xlu0 %v806, 127
        %v832 = vpop.permute.xlu0 %831
        %833 = vrot.lane.b32.xlu0 %v807, 127
        %v834 = vpop.permute.xlu0 %833
        %835 = vrot.lane.b32.xlu0 %v808, 127
        %v836 = vpop.permute.xlu0 %835
        %v837 = vsel %vm474, %v832, %v834
        %v838 = vsel %vm474, %v834, %v836
        %842 = vrot.lane.b32.xlu0 %v812, 126
        %v843 = vpop.permute.xlu0 %842
        %844 = vrot.lane.b32.xlu0 %v813, 126
        %v845 = vpop.permute.xlu0 %844
        %846 = vrot.lane.b32.xlu0 %v814, 126
        %v847 = vpop.permute.xlu0 %846
        %v848 = vsel %vm538, %v843, %v845
        %v849 = vsel %vm538, %v845, %v847
        %853 = vrot.lane.b32.xlu0 %v815, 112
        %v854 = vpop.permute.xlu0 %853
        %855 = vrot.lane.b32.xlu0 %v816, 112
        %v856 = vpop.permute.xlu0 %855
        %857 = vrot.lane.b32.xlu0 %v817, 112
        %v858 = vpop.permute.xlu0 %857
        %v859 = vsel %vm550, %v854, %v856
        %v860 = vsel %vm550, %v856, %v858
        %861 = vrot.lane.b32.xlu0 %v807, 111
        %v862 = vpop.permute.xlu0 %861
        %863 = vrot.lane.b32.xlu0 %v808, 111
        %v864 = vpop.permute.xlu0 %863
        %v865 = vsel %vm448, %v862, %v864
        %869 = vrot.lane.b32.xlu0 %v819, 110
        %v870 = vpop.permute.xlu0 %869
        %871 = vrot.lane.b32.xlu0 %v820, 110
        %v872 = vpop.permute.xlu0 %871
        %873 = vrot.lane.b32.xlu0 %v821, 110
        %v874 = vpop.permute.xlu0 %873
        %v875 = vsel %vm567, %v870, %v872
        %v876 = vsel %vm567, %v872, %v874
        %880 = vrot.lane.b32.xlu0 %v822, 96
        %v881 = vpop.permute.xlu0 %880
        %882 = vrot.lane.b32.xlu0 %v823, 96
        %v883 = vpop.permute.xlu0 %882
        %884 = vrot.lane.b32.xlu0 %v824, 96
        %v885 = vpop.permute.xlu0 %884
        %v886 = vsel %vm579, %v881, %v883
        %v887 = vsel %vm579, %v883, %v885
        %889 = vrot.lane.b32.xlu0 %v807, 95
        %v890 = vpop.permute.xlu0 %889
        %891 = vrot.lane.b32.xlu0 %v808, 95
        %v892 = vpop.permute.xlu0 %891
        %893 = vrot.lane.b32.xlu0 %v818, 95
        %v894 = vpop.permute.xlu0 %893
        %v895 = vsel %vm589, %v890, %v892
        %v896 = vsel %vm589, %v892, %v894
        %900 = vrot.lane.b32.xlu0 %v825, 94
        %v901 = vpop.permute.xlu0 %900
        %902 = vrot.lane.b32.xlu0 %v826, 94
        %v903 = vpop.permute.xlu0 %902
        %904 = vrot.lane.b32.xlu0 %v827, 94
        %v905 = vpop.permute.xlu0 %904
        %v906 = vsel %vm601, %v901, %v903
        %v907 = vsel %vm601, %v903, %v905
        %911 = vrot.lane.b32.xlu0 %v809, 17
        %v912 = vpop.permute.xlu0 %911
        %913 = vrot.lane.b32.xlu0 %v810, 17
        %v914 = vpop.permute.xlu0 %913
        %915 = vrot.lane.b32.xlu0 %v811, 17
        %v916 = vpop.permute.xlu0 %915
        %917 = vrot.lane.b32.xlu0 %v837, 17
        %v918 = vpop.permute.xlu0 %917
        %919 = vrot.lane.b32.xlu0 %v838, 17
        %v920 = vpop.permute.xlu0 %919
        %921 = vrot.lane.b32.xlu0 %v836, 17
        %v922 = vpop.permute.xlu0 %921
        %923 = vrot.lane.b32.xlu0 %v848, 17
        %v924 = vpop.permute.xlu0 %923
        %925 = vrot.lane.b32.xlu0 %v849, 17
        %v926 = vpop.permute.xlu0 %925
        %927 = vrot.lane.b32.xlu0 %v847, 17
        %v928 = vpop.permute.xlu0 %927
        %929 = vrot.lane.b32.xlu0 %v859, 17
        %v930 = vpop.permute.xlu0 %929
        %931 = vrot.lane.b32.xlu0 %v860, 17
        %v932 = vpop.permute.xlu0 %931
        %933 = vrot.lane.b32.xlu0 %v858, 17
        %v934 = vpop.permute.xlu0 %933
        %935 = vrot.lane.b32.xlu0 %v862, 17
        %v936 = vpop.permute.xlu0 %935
        %937 = vrot.lane.b32.xlu0 %v865, 17
        %v938 = vpop.permute.xlu0 %937
        %939 = vrot.lane.b32.xlu0 %v864, 17
        %v940 = vpop.permute.xlu0 %939
        %941 = vrot.lane.b32.xlu0 %v870, 17
        %v942 = vpop.permute.xlu0 %941
        %943 = vrot.lane.b32.xlu0 %v875, 17
        %v944 = vpop.permute.xlu0 %943
        %945 = vrot.lane.b32.xlu0 %v876, 17
        %v946 = vpop.permute.xlu0 %945
        %947 = vrot.lane.b32.xlu0 %v881, 17
        %v948 = vpop.permute.xlu0 %947
        %949 = vrot.lane.b32.xlu0 %v886, 17
        %v950 = vpop.permute.xlu0 %949
        %951 = vrot.lane.b32.xlu0 %v887, 17
        %v952 = vpop.permute.xlu0 %951
        %953 = vrot.lane.b32.xlu0 %v890, 17
        %v954 = vpop.permute.xlu0 %953
        %955 = vrot.lane.b32.xlu0 %v895, 17
        %v956 = vpop.permute.xlu0 %955
        %957 = vrot.lane.b32.xlu0 %v896, 17
        %v958 = vpop.permute.xlu0 %957
        %959 = vrot.lane.b32.xlu0 %v901, 17
        %v960 = vpop.permute.xlu0 %959
        %961 = vrot.lane.b32.xlu0 %v906, 17
        %v962 = vpop.permute.xlu0 %961
        %963 = vrot.lane.b32.xlu0 %v907, 17
        %v964 = vpop.permute.xlu0 %963
        %v965 = vsel %vm428, %v912, %v914
        %v966 = vsel %vm428, %v914, %v916
        %v967 = vsel %vm428, %v918, %v920
        %v968 = vsel %vm428, %v920, %v922
        %v969 = vsel %vm428, %v924, %v926
        %v970 = vsel %vm428, %v926, %v928
        %v971 = vsel %vm428, %v930, %v932
        %v972 = vsel %vm428, %v932, %v934
        %v973 = vsel %vm428, %v936, %v938
        %v974 = vsel %vm428, %v938, %v940
        %v975 = vsel %vm428, %v942, %v944
        %v976 = vsel %vm428, %v944, %v946
        %v977 = vsel %vm428, %v948, %v950
        %v978 = vsel %vm428, %v950, %v952
        %v979 = vsel %vm428, %v954, %v956
        %v980 = vsel %vm428, %v956, %v958
        %v981 = vsel %vm428, %v960, %v962
        %v982 = vsel %vm428, %v962, %v964
        %1001 = vmatpush.msra.mxu0 0.0
        %1002 = vmatpush.msra.mxu0 0.0
        %1003 = vmatpush.msra.mxu0 0.0
        %1004 = vmatpush.msra.mxu0 0.0
        %1005 = vmatpush.msra.mxu0 0.0
        %1006 = vmatpush.msra.mxu0 0.0
        %1007 = vmatpush.msra.mxu0 0.0
        %1008 = vmatpush.msra.mxu0 %v981
        %1009 = vmatpush.msra.mxu0 %v979
        %1010 = vmatpush.msra.mxu0 %v977
        %1011 = vmatpush.msra.mxu0 %v975
        %1012 = vmatpush.msra.mxu0 %v973
        %1013 = vmatpush.msra.mxu0 %v971
        %1014 = vmatpush.msra.mxu0 %v969
        %1015 = vmatpush.msra.mxu0 %v967
        %1016 = vmatpush.msra.mxu0 %v965
        %1017 = vmatmul.f32.gmra.mxu0 %v699
        %v1018 = vpop.f32.mrf.mxu0
        %v1019 = vadd.f32 %v412, %v1018
        %1020 = vmatmul.f32.gmra.mxu0 %v702
        %v1021 = vpop.f32.mrf.mxu0
        %v1022 = vadd.f32 %v414, %v1021
        %1023 = vmatmul.f32.gmra.mxu0 %v705
        %v1024 = vpop.f32.mrf.mxu0
        %v1025 = vadd.f32 %v416, %v1024
        %1026 = vmatmul.f32.gmra.mxu0 %v708
        %v1027 = vpop.f32.mrf.mxu0
        %v1028 = vadd.f32 %v418, %v1027
        %1029 = vdwg.mxu0
        %1030 = vmatpush.msra.mxu0 0.0
        %1031 = vmatpush.msra.mxu0 0.0
        %1032 = vmatpush.msra.mxu0 0.0
        %1033 = vmatpush.msra.mxu0 0.0
        %1034 = vmatpush.msra.mxu0 0.0
        %1035 = vmatpush.msra.mxu0 0.0
        %1036 = vmatpush.msra.mxu0 0.0
        %1037 = vmatpush.msra.mxu0 %v982
        %1038 = vmatpush.msra.mxu0 %v980
        %1039 = vmatpush.msra.mxu0 %v978
        %1040 = vmatpush.msra.mxu0 %v976
        %1041 = vmatpush.msra.mxu0 %v974
        %1042 = vmatpush.msra.mxu0 %v972
        %1043 = vmatpush.msra.mxu0 %v970
        %1044 = vmatpush.msra.mxu0 %v968
        %1045 = vmatpush.msra.mxu0 %v966
        %1046 = vmatmul.f32.gmra.mxu0 %v699
        %v1047 = vpop.f32.mrf.mxu0
        %v1048 = vadd.f32 %v413, %v1047
        %1049 = vmatmul.f32.gmra.mxu0 %v702
        %v1050 = vpop.f32.mrf.mxu0
        %v1051 = vadd.f32 %v415, %v1050
        %1052 = vmatmul.f32.gmra.mxu0 %v705
        %v1053 = vpop.f32.mrf.mxu0
        %v1054 = vadd.f32 %v417, %v1053
        %1055 = vmatmul.f32.gmra.mxu0 %v708
        %v1056 = vpop.f32.mrf.mxu0
        %v1057 = vadd.f32 %v419, %v1056
        %1058 = vdwg.mxu0
        %s1059 = scalar_lea.vmem %s339, 2 [#allocation6]
        %v1060 = vld [vmem:[%s1059] sm:$0x3]
        %v1062 = vperm.slane %v1060, 0
        %v1063 = vperm.slane %v1060, 1
        %v1066 = vmul.f32 %v1019, %v1062
        %v1067 = vmul.f32 %v1048, %v1063
        %v1068 = vmul.f32 %v1022, %v1062
        %v1069 = vmul.f32 %v1051, %v1063
        %s1070 = scalar_lea.vmem %s349, 2 [#allocation8]
        %v1071 = vld [vmem:[%s1070] sm:$0x3]
        %v1073 = vperm.slane %v1071, 0
        %v1074 = vperm.slane %v1071, 1
        %v1077 = vmul.f32 %v1025, %v1073
        %v1078 = vmul.f32 %v1054, %v1074
        %v1079 = vmul.f32 %v1028, %v1073
        %v1080 = vmul.f32 %v1057, %v1074
        %v1081 = vadd.f32 %v1066, %v1077
        %v1082 = vadd.f32 %v1067, %v1078
        %v1083 = vadd.f32 %v1068, %v1079
        %v1084 = vadd.f32 %v1069, %v1080
        %s1085 = scalar_lea.vmem %s403, 32 [#allocation14]
        %1086 = vst [vmem:[%s1085] sm:$0xff] %v1081
        %1087 = vst [vmem:[%s1085 + $0x8] sm:$0xff] %v1082
        %1088 = vst [vmem:[%s1085 + $0x10] sm:$0xff] %v1083
        %1089 = vst [vmem:[%s1085 + $0x18] sm:$0xff] %v1084
        %s1090 = sand.u32 %s177, 1
        %s1091 = scalar_lea.sflag [#allocation5], %s1090
        %s1092 = sand.u32 %s177, 1
        %s1093 = smul.addr %s1092, 64
        %s1094 = scalar_lea.vmem [#allocation14], %s1093
        // Predicated region
        $region69: #{tpu_custom_call.1} parent=43 // pred_check
          %p1095 = pneg %p187
        $region70: #{tpu_custom_call.1} parent=43 // pred_check_branch
          %1097 = sbr.rel (%p1095) target = $region72
        $region71: #{tpu_custom_call.1} parent=43 // pred_region
          %s1098 = smul.u32 2, %s28
          %1100 = vsyncadd %s1091, 0
          %s1101 = smul.addr %s1098, 4
          %s1102 = smul.addr %s1101, 8
          %s1103 = scalar_lea.hbm %s6, %s1102
          %s1104 = sshll.u32 %s1094, 4
          %s1105 = int_to_ptr.vmem [resolvable:$true] %s1104
          %s1106 = sshll.u32 %s1103, 4
          %s1107 = int_to_ptr.hbm [resolvable:$true] %s1106
          %1112 = dma.vmem_to_hbm [thread:$0]  %s1105, 1024, %s1107, %s1091, 256, 256, 16
        $region72: #{tpu_custom_call.1} parent=43 // pred_fallthru
          _
      $region44: #{tpu_custom_call.1} parent=5 // pred_fallthru
        _
      %p1113 = scmp.le.s32.totalorder 2, %s23
      // Predicated region
      $region73: #{tpu_custom_call.1} parent=5 // pred_check
        %p1114 = pneg %p1113
      $region74: #{tpu_custom_call.1} parent=5 // pred_check_branch
        %1116 = sbr.rel (%p1114) target = $region76
      $region75: #{tpu_custom_call.1} parent=5 // pred_region
        %s1117 = ssub.s32 %s23, 2
        // Predicated region
        $region77: #{tpu_custom_call.1} parent=75 // pred_check
          %p1118 = pneg %p193
        $region78: #{tpu_custom_call.1} parent=75 // pred_check_branch
          %1120 = sbr.rel (%p1118) target = $region80
        $region79: #{tpu_custom_call.1} parent=75 // pred_region
          %s1121 = sand.u32 %s178, 1
          %s1122 = scalar_lea.sflag [#allocation5], %s1121
          %s1123 = sand.u32 %s178, 1
          %s1124 = smul.addr %s1123, 64
          %s1125 = scalar_lea.vmem [#allocation14], %s1124
          %1127 = dma.done %s1122, 1024
        $region80: #{tpu_custom_call.1} parent=75 // pred_fallthru
          _
      $region76: #{tpu_custom_call.1} parent=5 // pred_fallthru
        _
    $region6: #{tpu_custom_call.1} parent=1 // loop_footer
      %s27 = sadd.s32 1, %s23
    $region7: #{tpu_custom_call.1} parent=1 // loop_footer_branch
      %22 = sbr.rel target = $region3
    $region8: #{tpu_custom_call.1} parent=1 // loop_exit
      _
    %1128 = vsyncpa [#allocation4], 1
    %s1129 = scalar_lea.sflag [#allocation4], 1
    %1130 = vsyncpa %s1129, 1
    %1131 = vsyncpa [#allocation7], 1
    %s1132 = scalar_lea.sflag [#allocation7], 1
    %1133 = vsyncpa %s1132, 1
    %1134 = vsyncpa [#allocation10], 1
    %1135 = vsyncpa [#allocation13], 1
    %1136 = vsyncpa [#allocation5], 1
    %s1137 = scalar_lea.sflag [#allocation5], 1
    %1138 = vsyncpa %s1137, 1

</llo_original>
